<compile_context>
chip_gen: v6e
topology: v6e:2x2x1
jax: 0.10.0
libtpu: 0.0.40
codegen_flags: <defaults>
</compile_context>

<pallas_src>
import jax
import jax.numpy as jnp
from jax.experimental import pallas as pl
from jax.experimental.pallas import tpu as pltpu


def _round_up(n: int, m: int) -> int:
    return ((n + m - 1) // m) * m


# Rows per grid step.  64K rows => ~1 MiB HBM traffic / ~20-25 MiB VMEM per
# step; safe on every generation (v7x: 64 MiB physical VMEM).  On v5e/v6e
# (128 MiB VMEM) this can be raised to 262144 together with vmem_limit_bytes.
_TB_CAP = 65536
_VMEM_LIMIT_BYTES = 48 * 1024 * 1024


def _mlp_kernel(x_ref, w1_ref, b1_ref, w2_ref, b2_ref, w3_ref, b3_ref, o_ref):
    # [F, B] layout: batch on the 128-wide lane axis.
    x = x_ref[...]                                                       # [3, TB]

    # Layer 1: Linear(3 -> 16) + ReLU   (MXU, batch on the N/lane axis)
    h1 = jnp.dot(w1_ref[...], x, preferred_element_type=jnp.float32)    # [16, TB]
    h1 = jnp.maximum(h1 + b1_ref[...], 0.0)                             # bias [16,1] lane-bcast

    # Layer 2: Linear(16 -> 8) + ReLU   (MXU)
    h2 = jnp.dot(w2_ref[...], h1, preferred_element_type=jnp.float32)   # [8, TB]
    h2 = jnp.maximum(h2 + b2_ref[...], 0.0)

    # Layer 3: Linear(8 -> 1) — broadcast multiply + sublane reduction on
    # VPU/XLU (an MXU matmul here would use 1/128 of the result width).
    h3 = jnp.sum(h2 * w3_ref[...], axis=0, keepdims=True) + b3_ref[...]  # [1, TB]

    # Sigmoid, fused into a single lane-dense store.  Exact reciprocal keeps
    # 1e-5 accuracy (approx=True would use the EUP vrcp path).
    o_ref[...] = pl.reciprocal(jnp.exp(-h3) + 1.0).astype(o_ref.dtype)


def simple_nn_forward(x, params):
    """x: [B, 3] float32. Returns [B, 1] float32."""
    w1, b1, w2, b2, w3t, b3 = params  # w1:[16,3] b1:[16,1] w2:[8,16] b2:[8,1] w3t:[8,1] b3:[1,1]
    B = x.shape[0]

    # Batch tile: multiple of 128 (lane width), capped at _TB_CAP rows.
    TB = min(_TB_CAP, _round_up(max(B, 1), 128))
    B_pad = _round_up(B, TB)
    grid = (B_pad // TB,)

    # Re-layout once: batch on the last (lane) axis.  The tail pad is applied
    # to the transposed array so XLA fuses transpose + pad into a single pass.
    x_t = jnp.pad(x.T, ((0, 0), (0, B_pad - B)))                         # [3, B_pad]

    weight_bytes = 4 * (16 * 3 + 16 + 8 * 16 + 8 + 8 + 1)
    cost = pl.CostEstimate(
        flops=400 * B_pad,                          # 2*(48+128+8) matmul + elementwise
        transcendentals=B_pad,                      # one exp per row
        bytes_accessed=16 * B_pad + weight_bytes,   # 3 f32 in + 1 f32 out per row
    )

    const = lambda i: (0, 0)

    out_t = pl.pallas_call(
        _mlp_kernel,
        out_shape=jax.ShapeDtypeStruct((1, B_pad), jnp.float32),
        grid_spec=pltpu.PrefetchScalarGridSpec(
            num_scalar_prefetch=0,
            grid=grid,
            in_specs=[
                pl.BlockSpec((3, TB), lambda i: (0, i)),   # x tile (lane-dense)
                pl.BlockSpec((16, 3), const),              # w1 (resident)
                pl.BlockSpec((16, 1), const),              # b1
                pl.BlockSpec((8, 16), const),              # w2
                pl.BlockSpec((8, 1), const),               # b2
                pl.BlockSpec((8, 1), const),               # w3 (stored [in, 1])
                pl.BlockSpec((1, 1), const),               # b3
            ],
            out_specs=pl.BlockSpec((1, TB), lambda i: (0, i)),  # lane-dense out
        ),
        compiler_params=pltpu.CompilerParams(
            # Pipelined + megacore-sharded on v7x (if xprof shows a single TC
            # active there, switch this axis to pltpu.CORE_PARALLEL).
            dimension_semantics=("parallel",),
            vmem_limit_bytes=_VMEM_LIMIT_BYTES,
        ),
        cost_estimate=cost,
    )(x_t, w1, b1, w2, b2, w3t, b3)

    # Undo the layout plumbing outside the kernel.
    return out_t[0, :B].reshape(B, 1)


def init_params(key):
    """Deterministic init matching PyTorch nn.Linear default:
    U(-1/sqrt(fan_in), 1/sqrt(fan_in)) for weight and bias.
    Weights kept in PyTorch [out, in] layout (matches the [F, B] compute);
    w3 stored transposed as [in, 1]; biases as [out, 1]."""
    dims = [(3, 16), (16, 8), (8, 1)]
    raw = []
    for fan_in, fan_out in dims:
        key, kw, kb = jax.random.split(key, 3)
        bound = 1.0 / jnp.sqrt(jnp.float32(fan_in))
        w = jax.random.uniform(kw, (fan_out, fan_in), jnp.float32, -bound, bound)
        b = jax.random.uniform(kb, (fan_out, 1), jnp.float32, -bound, bound)
        raw.extend([w, b])
    w1, b1, w2, b2, w3, b3 = raw
    return (w1, b1, w2, b2, w3.T, b3)   # w3.T: [8, 1]


def reference_forward(x, params):
    w1, b1, w2, b2, w3t, b3 = params
    h = jnp.maximum(x @ w1.T + b1[:, 0], 0.0)
    h = jnp.maximum(h @ w2.T + b2[:, 0], 0.0)
    return jax.nn.sigmoid(h @ w3t + b3[:, 0])


if __name__ == "__main__":
    key = jax.random.PRNGKey(0)
    key, kx1, kx2 = jax.random.split(key, 3)
    params = init_params(key)

    # Small batch (single tile).
    B = 8
    x = jax.random.normal(kx1, (B, 3), jnp.float32)
    out = jax.block_until_ready(simple_nn_forward(x, params))
    ref = reference_forward(x, params)
    assert out.shape == (B, 1), out.shape
    assert jnp.allclose(out, ref, atol=1e-5, rtol=1e-5), (out, ref)

    # Non-multiple-of-128 batch to exercise the padded-tail path.
    B2 = 300
    x2 = jax.random.normal(kx2, (B2, 3), jnp.float32)
    out2 = jax.block_until_ready(simple_nn_forward(x2, params))
    ref2 = reference_forward(x2, params)
    assert out2.shape == (B2, 1), out2.shape
    assert jnp.allclose(out2, ref2, atol=1e-5, rtol=1e-5)

    print("KERNEL_OK")
</pallas_src>

<mosaic_0001>
module attributes {stable_mosaic.version = 11 : i64} {
  func.func @_mlp_kernel(%arg0: i32, %arg1: memref<3x128xf32, #tpu.memory_space<vmem>>, %arg2: memref<16x3xf32, #tpu.memory_space<vmem>>, %arg3: memref<16x1xf32, #tpu.memory_space<vmem>>, %arg4: memref<8x16xf32, #tpu.memory_space<vmem>>, %arg5: memref<8x1xf32, #tpu.memory_space<vmem>>, %arg6: memref<8x1xf32, #tpu.memory_space<vmem>>, %arg7: memref<1x1xf32, #tpu.memory_space<vmem>>, %arg8: memref<1x128xf32, #tpu.memory_space<vmem>>) attributes {dimension_semantics = [#tpu.dimension_semantics<parallel>], iteration_bounds = array<i64: 1>, scalar_prefetch = 0 : i64, scratch_operands = 0 : i64, tpu.core_type = #tpu.core_type<tc>, window_params = [{transform_indices = @transform_0, window_bounds = array<i64: 3, 128>}, {pipeline_mode = #tpu.pipeline_mode<synchronous>, transform_indices = @transform_1, window_bounds = array<i64: 16, 3>}, {pipeline_mode = #tpu.pipeline_mode<synchronous>, transform_indices = @transform_2, window_bounds = array<i64: 16, 1>}, {pipeline_mode = #tpu.pipeline_mode<synchronous>, transform_indices = @transform_3, window_bounds = array<i64: 8, 16>}, {pipeline_mode = #tpu.pipeline_mode<synchronous>, transform_indices = @transform_4, window_bounds = array<i64: 8, 1>}, {pipeline_mode = #tpu.pipeline_mode<synchronous>, transform_indices = @transform_5, window_bounds = array<i64: 8, 1>}, {pipeline_mode = #tpu.pipeline_mode<synchronous>, transform_indices = @transform_6, window_bounds = array<i64: 1, 1>}, {transform_indices = @transform_7, window_bounds = array<i64: 1, 128>}]} {
    %c0 = arith.constant 0 : index
    %c0_0 = arith.constant 0 : index
    %0 = vector.load %arg1[%c0, %c0_0] : memref<3x128xf32, #tpu.memory_space<vmem>>, vector<3x128xf32>
    %c0_1 = arith.constant 0 : index
    %c0_2 = arith.constant 0 : index
    %1 = vector.load %arg2[%c0_1, %c0_2] : memref<16x3xf32, #tpu.memory_space<vmem>>, vector<16x3xf32>
    %cst = arith.constant dense<0.000000e+00> : vector<16x128xf32>
    %2 = tpu.matmul %1, %0, %cst {dimension_numbers = #tpu.dot_dimension_numbers<[1], [0], [0], [1], [0, 0, 1, 1], [], []>} : vector<16x3xf32>, vector<3x128xf32>, vector<16x128xf32> -> vector<16x128xf32>
    %c0_3 = arith.constant 0 : index
    %c0_4 = arith.constant 0 : index
    %3 = vector.load %arg3[%c0_3, %c0_4] : memref<16x1xf32, #tpu.memory_space<vmem>>, vector<16x1xf32>
    %4 = vector.broadcast %3 : vector<16x1xf32> to vector<16x128xf32>
    %5 = arith.addf %2, %4 : vector<16x128xf32>
    %cst_5 = arith.constant 0.000000e+00 : f32
    %6 = vector.broadcast %cst_5 : f32 to vector<16x128xf32>
    %7 = arith.maximumf %5, %6 : vector<16x128xf32>
    %c0_6 = arith.constant 0 : index
    %c0_7 = arith.constant 0 : index
    %8 = vector.load %arg4[%c0_6, %c0_7] : memref<8x16xf32, #tpu.memory_space<vmem>>, vector<8x16xf32>
    %cst_8 = arith.constant dense<0.000000e+00> : vector<8x128xf32>
    %9 = tpu.matmul %8, %7, %cst_8 {dimension_numbers = #tpu.dot_dimension_numbers<[1], [0], [0], [1], [0, 0, 1, 1], [], []>} : vector<8x16xf32>, vector<16x128xf32>, vector<8x128xf32> -> vector<8x128xf32>
    %c0_9 = arith.constant 0 : index
    %c0_10 = arith.constant 0 : index
    %10 = vector.load %arg5[%c0_9, %c0_10] : memref<8x1xf32, #tpu.memory_space<vmem>>, vector<8x1xf32>
    %11 = vector.broadcast %10 : vector<8x1xf32> to vector<8x128xf32>
    %12 = arith.addf %9, %11 : vector<8x128xf32>
    %cst_11 = arith.constant 0.000000e+00 : f32
    %13 = vector.broadcast %cst_11 : f32 to vector<8x128xf32>
    %14 = arith.maximumf %12, %13 : vector<8x128xf32>
    %c0_12 = arith.constant 0 : index
    %c0_13 = arith.constant 0 : index
    %15 = vector.load %arg6[%c0_12, %c0_13] : memref<8x1xf32, #tpu.memory_space<vmem>>, vector<8x1xf32>
    %16 = vector.broadcast %15 : vector<8x1xf32> to vector<8x128xf32>
    %17 = arith.mulf %14, %16 : vector<8x128xf32>
    %cst_14 = arith.constant dense<0.000000e+00> : vector<128xf32>
    %18 = vector.multi_reduction <add>, %17, %cst_14 [0] : vector<8x128xf32> to vector<128xf32>
    %19 = vector.shape_cast %18 : vector<128xf32> to vector<1x128xf32>
    %c0_15 = arith.constant 0 : index
    %c0_16 = arith.constant 0 : index
    %20 = vector.load %arg7[%c0_15, %c0_16] : memref<1x1xf32, #tpu.memory_space<vmem>>, vector<1x1xf32>
    %21 = vector.broadcast %20 : vector<1x1xf32> to vector<1x128xf32>
    %22 = arith.addf %19, %21 : vector<1x128xf32>
    %cst_17 = arith.constant 0.000000e+00 : f32
    %23 = vector.broadcast %cst_17 : f32 to vector<1x128xf32>
    %24 = arith.subf %23, %22 : vector<1x128xf32>
    %25 = math.exp %24 : vector<1x128xf32>
    %cst_18 = arith.constant 1.000000e+00 : f32
    %26 = vector.broadcast %cst_18 : f32 to vector<1x128xf32>
    %27 = arith.addf %25, %26 : vector<1x128xf32>
    %28 = tpu.reciprocal %27 : vector<1x128xf32> -> vector<1x128xf32>
    %c0_19 = arith.constant 0 : index
    %c0_20 = arith.constant 0 : index
    %29 = vector.load %arg8[%c0_19, %c0_20] : memref<1x128xf32, #tpu.memory_space<vmem>>, vector<1x128xf32>
    tpu.vector_store %arg8[%c0_19, %c0_20], %28 {strides = array<i32>} : memref<1x128xf32, #tpu.memory_space<vmem>>, vector<1x128xf32>,
    return
  }
  func.func @transform_0(%arg0: i32) -> (i32, i32) {
    %c0_i32 = arith.constant 0 : i32
    %c0_i32_0 = arith.constant 0 : i32
    return %c0_i32, %arg0 : i32, i32
  }
  func.func @transform_1(%arg0: i32) -> (i32, i32) {
    %c0_i32 = arith.constant 0 : i32
    %c0_i32_0 = arith.constant 0 : i32
    %c0_i32_1 = arith.constant 0 : i32
    return %c0_i32, %c0_i32_0 : i32, i32
  }
  func.func @transform_2(%arg0: i32) -> (i32, i32) {
    %c0_i32 = arith.constant 0 : i32
    %c0_i32_0 = arith.constant 0 : i32
    %c0_i32_1 = arith.constant 0 : i32
    return %c0_i32, %c0_i32_0 : i32, i32
  }
  func.func @transform_3(%arg0: i32) -> (i32, i32) {
    %c0_i32 = arith.constant 0 : i32
    %c0_i32_0 = arith.constant 0 : i32
    %c0_i32_1 = arith.constant 0 : i32
    return %c0_i32, %c0_i32_0 : i32, i32
  }
  func.func @transform_4(%arg0: i32) -> (i32, i32) {
    %c0_i32 = arith.constant 0 : i32
    %c0_i32_0 = arith.constant 0 : i32
    %c0_i32_1 = arith.constant 0 : i32
    return %c0_i32, %c0_i32_0 : i32, i32
  }
  func.func @transform_5(%arg0: i32) -> (i32, i32) {
    %c0_i32 = arith.constant 0 : i32
    %c0_i32_0 = arith.constant 0 : i32
    %c0_i32_1 = arith.constant 0 : i32
    return %c0_i32, %c0_i32_0 : i32, i32
  }
  func.func @transform_6(%arg0: i32) -> (i32, i32) {
    %c0_i32 = arith.constant 0 : i32
    %c0_i32_0 = arith.constant 0 : i32
    %c0_i32_1 = arith.constant 0 : i32
    return %c0_i32, %c0_i32_0 : i32, i32
  }
  func.func @transform_7(%arg0: i32) -> (i32, i32) {
    %c0_i32 = arith.constant 0 : i32
    %c0_i32_0 = arith.constant 0 : i32
    return %c0_i32, %arg0 : i32, i32
  }
}

</mosaic_0001>

<llo_original>
// kernel: tpu_custom_call.1
$region0: #{tpu_custom_call.1}
  #allocation0 [shape = 'u32[]', space=smem, size = 0x4, offset = 0x4, fixed_abs, tag = 'smem constant byte address 0x4 - core index']
  #allocation1 [shape = 'u32[144,128]{1,0:T(1,128)}', space=vmem, size = 0x12000, scoped, tag = 'internal scratch']
  #allocation2 [shape = 'f32[1,1]{1,0:T(1,128)S(1)}', space=vmem, size = 0x200, scoped, tag = 'scoped memory for tpu_custom_call.1']
  %s0 = inlined_call_operand.vmem [shape: f32[3,128], index: 0, kind: input, shape index: {}]
  %s1 = inlined_call_operand.vmem [shape: f32[16,3], index: 1, kind: input, shape index: {}]
  %s2 = inlined_call_operand.vmem [shape: f32[16,1], index: 2, kind: input, shape index: {}]
  %s3 = inlined_call_operand.vmem [shape: f32[8,16], index: 3, kind: input, shape index: {}]
  %s4 = inlined_call_operand.vmem [shape: f32[8,1], index: 4, kind: input, shape index: {}]
  %s5 = inlined_call_operand.vmem [shape: f32[8,1], index: 5, kind: input, shape index: {}]
  %s6 = inlined_call_operand.<no memory space> [shape: f32[1,1], index: 6, kind: input, shape index: {}]
  %s7 = inlined_call_operand.hbm [shape: f32[1,128], index: 7, kind: output, shape index: {}]
  %s8 = sld [smem:[#allocation0]]
  $region38: #{tpu_custom_call.1} parent=0
    _
  %s10 = ssub.s32 1, %s8
  %s11 = scalar_select 0, %s10, %s8
  %v12 = vstv %s6
  %13 = vst [vmem:[#allocation2] sm:$0x1] %v12
  $region1: #{tpu_custom_call.1} parent=0
    #allocation3 [shape = 'u8[512]{0}', space=vmem, size = 0x400, scoped, tag = 'output window, operand 0, single buffered']
    #allocation4 [shape = 's32[1]{0}', space=sflag, size = 0x4, scoped, tag = 'scoped memory for tpu_custom_call.1']
    %14 = vsyncpa [#allocation4], 0
    // Predicated region
    $region2: #{tpu_custom_call.1} parent=1 // pred_check
      _
    $region3: #{tpu_custom_call.1} parent=1 // pred_check_branch
      %16 = sbr.rel (0) target = $region5
    $region4: #{tpu_custom_call.1} parent=1 // pred_region
      _
    $region5: #{tpu_custom_call.1} parent=1 // pred_fallthru
      _
    // Predicated region
    $region6: #{tpu_custom_call.1} parent=1 // pred_check
      _
    $region7: #{tpu_custom_call.1} parent=1 // pred_check_branch
      %18 = sbr.rel (0) target = $region9
    $region8: #{tpu_custom_call.1} parent=1 // pred_region
      _
    $region9: #{tpu_custom_call.1} parent=1 // pred_fallthru
      _
    // Predicated region
    $region10: #{tpu_custom_call.1} parent=1 // pred_check
      _
    $region11: #{tpu_custom_call.1} parent=1 // pred_check_branch
      %20 = sbr.rel (0) target = $region13
    $region12: #{tpu_custom_call.1} parent=1 // pred_region
      _
    $region13: #{tpu_custom_call.1} parent=1 // pred_fallthru
      _
    // Predicated region
    $region14: #{tpu_custom_call.1} parent=1 // pred_check
      _
    $region15: #{tpu_custom_call.1} parent=1 // pred_check_branch
      %22 = sbr.rel (0) target = $region17
    $region16: #{tpu_custom_call.1} parent=1 // pred_region
      _
    $region17: #{tpu_custom_call.1} parent=1 // pred_fallthru
      _
    // Predicated region
    $region18: #{tpu_custom_call.1} parent=1 // pred_check
      _
    $region19: #{tpu_custom_call.1} parent=1 // pred_check_branch
      %24 = sbr.rel (0) target = $region21
    $region20: #{tpu_custom_call.1} parent=1 // pred_region
      _
    $region21: #{tpu_custom_call.1} parent=1 // pred_fallthru
      _
    // Predicated region
    $region22: #{tpu_custom_call.1} parent=1 // pred_check
      _
    $region23: #{tpu_custom_call.1} parent=1 // pred_check_branch
      %26 = sbr.rel (0) target = $region25
    $region24: #{tpu_custom_call.1} parent=1 // pred_region
      _
    $region25: #{tpu_custom_call.1} parent=1 // pred_fallthru
      _
    // Predicated region
    $region26: #{tpu_custom_call.1} parent=1 // pred_check
      _
    $region27: #{tpu_custom_call.1} parent=1 // pred_check_branch
      %28 = sbr.rel (0) target = $region29
    $region28: #{tpu_custom_call.1} parent=1 // pred_region
      _
    $region29: #{tpu_custom_call.1} parent=1 // pred_fallthru
      _
    %v29 = vld [vmem:[%s0] sm:$0x7]
    %v30 = vld [vmem:[%s1] sm:$0xff]
    %v31 = vld [vmem:[%s1 + $0x8] sm:$0xff]
    %v32 = vld [vmem:[%s2] sm:$0xff]
    %v33 = vld [vmem:[%s2 + $0x8] sm:$0xff]
    %35 = vset.pattern.permute.xlu0 0
    %36 = vperm.xlu0 %35, %v32
    %v37 = vpop.permute.xlu0 %36
    %40 = vset.pattern.permute.xlu0 0
    %41 = vperm.xlu0 %40, %v33
    %v42 = vpop.permute.xlu0 %41
    %vm44 = vcmask 23552
    %v46 = vsel %vm44, %v30, 0
    %v49 = vsel %vm44, %v31, 0
    %vm51 = vcmask 1042432
    %v53 = vsel %vm51, %v29, 0
    %55 = vmatprep.subr.mxu0 0.0
    %56 = vmatpush1.msra.mxu0 0.0
    %57 = vmatprep.subr.mxu0 0.0
    %58 = vmatpush1.msra.mxu0 0.0
    %59 = vmatprep.subr.mxu0 0.0
    %60 = vmatpush1.msra.mxu0 0.0
    %61 = vmatprep.subr.mxu0 0.0
    %62 = vmatpush1.msra.mxu0 0.0
    %63 = vmatprep.subr.mxu0 0.0
    %64 = vmatpush1.msra.mxu0 0.0
    %65 = vmatprep.subr.mxu0 0.0
    %66 = vmatpush1.msra.mxu0 0.0
    %67 = vmatprep.subr.mxu0 0.0
    %68 = vmatpush1.msra.mxu0 0.0
    %69 = vmatprep.subr.mxu0 0.0
    %70 = vmatpush1.msra.mxu0 0.0
    %71 = vmatprep.subr.mxu0 0.0
    %72 = vmatpush1.msra.mxu0 0.0
    %73 = vmatprep.subr.mxu0 0.0
    %74 = vmatpush1.msra.mxu0 0.0
    %75 = vmatprep.subr.mxu0 0.0
    %76 = vmatpush1.msra.mxu0 0.0
    %77 = vmatprep.subr.mxu0 0.0
    %78 = vmatpush1.msra.mxu0 0.0
    %79 = vmatprep.subr.mxu0 0.0
    %80 = vmatpush1.msra.mxu0 0.0
    %81 = vmatprep.subr.mxu0 0.0
    %82 = vmatpush1.msra.mxu0 0.0
    %83 = vmatprep.subr.mxu0 0.0
    %84 = vmatpush1.msra.mxu0 0.0
    %85 = vmatprep.subr.mxu0 0.0
    %86 = vmatpush1.msra.mxu0 %v53
    %87 = vmatprep.subr.mxu0 0.0
    %88 = vmatpush2.msra.mxu0 0.0
    %89 = vmatprep.subr.mxu0 0.0
    %90 = vmatpush2.msra.mxu0 0.0
    %91 = vmatprep.subr.mxu0 0.0
    %92 = vmatpush2.msra.mxu0 0.0
    %93 = vmatprep.subr.mxu0 0.0
    %94 = vmatpush2.msra.mxu0 0.0
    %95 = vmatprep.subr.mxu0 0.0
    %96 = vmatpush2.msra.mxu0 0.0
    %97 = vmatprep.subr.mxu0 0.0
    %98 = vmatpush2.msra.mxu0 0.0
    %99 = vmatprep.subr.mxu0 0.0
    %100 = vmatpush2.msra.mxu0 0.0
    %101 = vmatprep.subr.mxu0 0.0
    %102 = vmatpush2.msra.mxu0 0.0
    %103 = vmatprep.subr.mxu0 0.0
    %104 = vmatpush2.msra.mxu0 0.0
    %105 = vmatprep.subr.mxu0 0.0
    %106 = vmatpush2.msra.mxu0 0.0
    %107 = vmatprep.subr.mxu0 0.0
    %108 = vmatpush2.msra.mxu0 0.0
    %109 = vmatprep.subr.mxu0 0.0
    %110 = vmatpush2.msra.mxu0 0.0
    %111 = vmatprep.subr.mxu0 0.0
    %112 = vmatpush2.msra.mxu0 0.0
    %113 = vmatprep.subr.mxu0 0.0
    %114 = vmatpush2.msra.mxu0 0.0
    %115 = vmatprep.subr.mxu0 0.0
    %116 = vmatpush2.msra.mxu0 0.0
    %117 = vmatprep.subr.mxu0 0.0
    %118 = vmatpush2.msra.mxu0 0.0
    %119 = vmatprep.mubr.f32.mxu0 0.0
    %120 = vmatmul.mubr.f32.gmra.mxu0 %v46
    %v121 = vpop.f32.mrf.mxu0
    %v122 = vadd.f32 %v37, %v121
    %v123 = vpop.f32.mrf.mxu0
    %124 = vmatprep.mubr.f32.mxu0 0.0
    %125 = vmatmul.mubr.f32.gmra.mxu0 %v49
    %v126 = vpop.f32.mrf.mxu0
    %v127 = vadd.f32 %v42, %v126
    %v128 = vpop.f32.mrf.mxu0
    %129 = vdwg.mxu0
    %v130 = vmax.f32 %v122, 0.0
    %v131 = vmax.f32 %v127, 0.0
    %v132 = vld [vmem:[%s3] sm:$0xff]
    %v133 = vld [vmem:[%s4] sm:$0xff]
    %135 = vset.pattern.permute.xlu0 0
    %136 = vperm.xlu0 %135, %v133
    %v137 = vpop.permute.xlu0 %136
    %vm139 = vcmask 130048
    %v141 = vsel %vm139, %v132, 0
    %143 = vmatprep.subr.mxu0 0.0
    %144 = vmatpush1.msra.mxu0 0.0
    %145 = vmatprep.subr.mxu0 0.0
    %146 = vmatpush1.msra.mxu0 0.0
    %147 = vmatprep.subr.mxu0 0.0
    %148 = vmatpush1.msra.mxu0 0.0
    %149 = vmatprep.subr.mxu0 0.0
    %150 = vmatpush1.msra.mxu0 0.0
    %151 = vmatprep.subr.mxu0 0.0
    %152 = vmatpush1.msra.mxu0 0.0
    %153 = vmatprep.subr.mxu0 0.0
    %154 = vmatpush1.msra.mxu0 0.0
    %155 = vmatprep.subr.mxu0 0.0
    %156 = vmatpush1.msra.mxu0 0.0
    %157 = vmatprep.subr.mxu0 0.0
    %158 = vmatpush1.msra.mxu0 0.0
    %159 = vmatprep.subr.mxu0 0.0
    %160 = vmatpush1.msra.mxu0 0.0
    %161 = vmatprep.subr.mxu0 0.0
    %162 = vmatpush1.msra.mxu0 0.0
    %163 = vmatprep.subr.mxu0 0.0
    %164 = vmatpush1.msra.mxu0 0.0
    %165 = vmatprep.subr.mxu0 0.0
    %166 = vmatpush1.msra.mxu0 0.0
    %167 = vmatprep.subr.mxu0 0.0
    %168 = vmatpush1.msra.mxu0 0.0
    %169 = vmatprep.subr.mxu0 0.0
    %170 = vmatpush1.msra.mxu0 0.0
    %171 = vmatprep.subr.mxu0 0.0
    %172 = vmatpush1.msra.mxu0 %v131
    %173 = vmatprep.subr.mxu0 0.0
    %174 = vmatpush1.msra.mxu0 %v130
    %175 = vmatprep.subr.mxu0 0.0
    %176 = vmatpush2.msra.mxu0 0.0
    %177 = vmatprep.subr.mxu0 0.0
    %178 = vmatpush2.msra.mxu0 0.0
    %179 = vmatprep.subr.mxu0 0.0
    %180 = vmatpush2.msra.mxu0 0.0
    %181 = vmatprep.subr.mxu0 0.0
    %182 = vmatpush2.msra.mxu0 0.0
    %183 = vmatprep.subr.mxu0 0.0
    %184 = vmatpush2.msra.mxu0 0.0
    %185 = vmatprep.subr.mxu0 0.0
    %186 = vmatpush2.msra.mxu0 0.0
    %187 = vmatprep.subr.mxu0 0.0
    %188 = vmatpush2.msra.mxu0 0.0
    %189 = vmatprep.subr.mxu0 0.0
    %190 = vmatpush2.msra.mxu0 0.0
    %191 = vmatprep.subr.mxu0 0.0
    %192 = vmatpush2.msra.mxu0 0.0
    %193 = vmatprep.subr.mxu0 0.0
    %194 = vmatpush2.msra.mxu0 0.0
    %195 = vmatprep.subr.mxu0 0.0
    %196 = vmatpush2.msra.mxu0 0.0
    %197 = vmatprep.subr.mxu0 0.0
    %198 = vmatpush2.msra.mxu0 0.0
    %199 = vmatprep.subr.mxu0 0.0
    %200 = vmatpush2.msra.mxu0 0.0
    %201 = vmatprep.subr.mxu0 0.0
    %202 = vmatpush2.msra.mxu0 0.0
    %203 = vmatprep.subr.mxu0 0.0
    %204 = vmatpush2.msra.mxu0 0.0
    %205 = vmatprep.subr.mxu0 0.0
    %206 = vmatpush2.msra.mxu0 0.0
    %207 = vmatprep.mubr.f32.mxu0 0.0
    %208 = vmatmul.mubr.f32.gmra.mxu0 %v141
    %v209 = vpop.f32.mrf.mxu0
    %v210 = vadd.f32 %v137, %v209
    %v211 = vpop.f32.mrf.mxu0
    %212 = vdwg.mxu0
    %v213 = vmax.f32 %v210, 0.0
    %v214 = vld [vmem:[%s5] sm:$0xff]
    %216 = vset.pattern.permute.xlu0 0
    %217 = vperm.xlu0 %216, %v214
    %v218 = vpop.permute.xlu0 %217
    %v220 = vmul.f32 %v213, %v218
    %v221 = vrot.slane %v220, 4
    %v222 = vadd.f32 %v220, %v221
    %v223 = vrot.slane %v222, 2
    %v224 = vadd.f32 %v222, %v223
    %v225 = vrot.slane %v224, 1
    %v226 = vadd.f32 %v224, %v225
    %v227 = vld [vmem:[#allocation2] sm:$0x1]
    %229 = vset.pattern.permute.xlu0 0
    %230 = vperm.xlu0 %229, %v227
    %v231 = vpop.permute.xlu0 %230
    %v233 = vlaneseq
    %v234 = vshrl.u32 %v233, 7
    %v235 = vsub.s32 0, %v234
    %v236 = vrot.slane %v231, %v235
    %v237 = vadd.f32 %v226, %v236
    %v238 = vsub.f32 0.0, %v237
    %v239 = vmul.f32 %v238, 1.442695
    %v240 = vpow.pop %v239
    %v241 = vadd.f32 %v240, 1.0
    %v242 = vrcp.pop %v241
    %243 = vst [vmem:[#allocation3] sm:$0x1] %v242
    // Predicated region
    $region30: #{tpu_custom_call.1} parent=1 // pred_check
      _
    $region31: #{tpu_custom_call.1} parent=1 // pred_check_branch
      %245 = sbr.rel (0) target = $region33
    $region32: #{tpu_custom_call.1} parent=1 // pred_region
      %s247 = ssub.s32 16, 16
      %248 = vsyncadd [#allocation4], %s247
      %s250 = sshll.u32 [#allocation3], 4
      %s251 = int_to_ptr.vmem [resolvable:$true] %s250
      %253 = dma.vmem_to_hbm [thread:$0]  %s251, 16, %s7, [#allocation4]
    $region33: #{tpu_custom_call.1} parent=1 // pred_fallthru
      _
    // Predicated region
    $region34: #{tpu_custom_call.1} parent=1 // pred_check
      _
    $region35: #{tpu_custom_call.1} parent=1 // pred_check_branch
      %255 = sbr.rel (0) target = $region37
    $region36: #{tpu_custom_call.1} parent=1 // pred_region
      %256 = dma.done [#allocation4], 16
    $region37: #{tpu_custom_call.1} parent=1 // pred_fallthru
      _
    %257 = vsyncpa [#allocation4], 1

</llo_original>
